<compile_context>
chip_gen: v6e
topology: v6e:2x2x1
jax: 0.10.0
libtpu: 0.0.40
codegen_flags: <defaults>
</compile_context>

<pallas_src>
import numpy as np
import jax
import jax.numpy as jnp
from jax.experimental import pallas as pl
from jax.experimental.pallas import tpu as pltpu


def _round_up(x: int, m: int) -> int:
    return (x + m - 1) // m * m


def _cdiv(a: int, b: int) -> int:
    return -(-a // b)


# ----------------------------- kernels --------------------------------------

def _kernel_plain(x_ref, t_ref, o_ref):
    x = x_ref[...].astype(jnp.float32)
    t = t_ref[...].astype(jnp.float32)
    t = jnp.where(jnp.isnan(t), x, t)
    o_ref[...] = jnp.abs(x - t).astype(o_ref.dtype)


def _kernel_cw(x_ref, t_ref, cw_ref, o_ref):
    x = x_ref[...].astype(jnp.float32)
    t = t_ref[...].astype(jnp.float32)
    t = jnp.where(jnp.isnan(t), x, t)
    # Signed code weights applied before abs -> exactly matches the reference.
    d = (x - t) * cw_ref[...].astype(jnp.float32)          # (1, L) broadcast
    o_ref[...] = jnp.abs(d).astype(o_ref.dtype)


def _kernel_w(x_ref, t_ref, w_ref, e_ref, o_ref):
    x = x_ref[...].astype(jnp.float32)
    t = t_ref[...].astype(jnp.float32)
    t = jnp.where(jnp.isnan(t), x, t)
    ad = jnp.abs(x - t)                                     # (bm, 128*C)
    w = w_ref[...].astype(jnp.float32)                      # (bm, 128) per-anchor
    # Expand per-anchor weights to per-element weights (folding |code_weights|)
    # with one MXU matmul:  (W @ E)[r, a*C + c] = w[r, a] * |cw[c]|
    we = jnp.dot(w, e_ref[...], preferred_element_type=jnp.float32)
    o_ref[...] = (ad * we).astype(o_ref.dtype)


# ----------------------------- wrapper ---------------------------------------

def weighted_l1_loss(inp, target, weights=None, code_weights=None, *,
                     block_rows=None):
    """Pallas implementation of WeightedL1Loss.forward.

    inp, target : (B, A, C) float
    weights     : (B, A) float or None
    code_weights: (C,) float (list/array) or None
    returns     : (B, A, C), same dtype as inp
    """
    B, A, C = inp.shape
    assert target.shape == (B, A, C)
    dtype = inp.dtype
    itemsize = jnp.dtype(dtype).itemsize

    has_w = weights is not None
    has_cw = code_weights is not None

    APR = 128                       # anchors per flat row
    lane_width = APR * C            # lane-dense (multiple of 128), whole anchors
    n_anchor = B * A

    # Sublane pack multiple (8 f32, 16 bf16, 32 int8/fp8); include weights dtype.
    sub = max(8, 32 // itemsize)
    if has_w:
        sub = max(sub, 32 // jnp.dtype(weights.dtype).itemsize)

    if n_anchor % APR == 0:
        n_anchor_pad = n_anchor                 # common PCDet case: no padding
    else:
        # Fallback: small anchor-axis pad (rows become a multiple of `sub`).
        n_anchor_pad = _round_up(n_anchor, APR * sub)
    pad_a = n_anchor_pad - n_anchor
    rows = n_anchor_pad // APR

    # ---- Lane-dense flat views. Pure reshapes (bitcast) when pad_a == 0.
    x2 = inp.reshape(n_anchor, C)
    t2 = target.reshape(n_anchor, C)
    if pad_a:
        x2 = jnp.pad(x2, ((0, pad_a), (0, 0)))
        t2 = jnp.pad(t2, ((0, pad_a), (0, 0)))
    x2 = x2.reshape(rows, lane_width)
    t2 = t2.reshape(rows, lane_width)

    # ---- Tile sizing: ~2 MiB per main tensor per buffer; ensure >= 2 grid
    #      steps when possible so both v7x TensorCores get tiles.
    if block_rows is None:
        block_rows = max(sub, ((2 << 20) // (lane_width * itemsize)) // sub * sub)
    else:
        block_rows = max(1, int(block_rows))
    if block_rows >= rows:
        block_rows = rows                       # full extent: always legal
    else:
        block_rows = min(rows, max(sub, _round_up(block_rows, sub)))
    if rows > sub and _cdiv(rows, block_rows) < 2:
        block_rows = max(sub, _round_up(_cdiv(rows, 2), sub))

    grid = (_cdiv(rows, block_rows),)           # ragged last block masked by Pallas
    main_spec = pl.BlockSpec((block_rows, lane_width), lambda r: (r, 0))

    in_specs = [main_spec, main_spec]
    args = [x2, t2]
    extra_vmem = 0
    extra_bytes = 0

    if has_w:
        assert weights.shape[0] == B and weights.shape[1] == A
        w2 = weights.reshape(n_anchor)
        if pad_a:
            w2 = jnp.pad(w2, (0, pad_a))
        w2 = w2.reshape(rows, APR)              # lane-dense per-anchor weights
        # Constant expansion matrix E (128, 128*C): E[a, a*C+c] = |cw[c]|.
        lanes = np.arange(lane_width)
        onehot = (lanes // C)[None, :] == np.arange(APR)[:, None]   # (128, L)
        if has_cw:
            cw_abs = jnp.abs(jnp.asarray(code_weights, jnp.float32))
        else:
            cw_abs = jnp.ones((C,), jnp.float32)
        e_mat = jnp.asarray(onehot, jnp.float32) * cw_abs[jnp.asarray(lanes % C)][None, :]

        w_spec = pl.BlockSpec((block_rows, APR), lambda r: (r, 0))
        e_spec = pl.BlockSpec((APR, lane_width), lambda r: (0, 0))   # constant block
        in_specs += [w_spec, e_spec]
        args += [w2, e_mat]
        kernel = _kernel_w
        w_isz = jnp.dtype(weights.dtype).itemsize
        extra_vmem = 2 * block_rows * APR * w_isz + 2 * APR * lane_width * 4
        extra_bytes = rows * APR * w_isz + APR * lane_width * 4
    elif has_cw:
        cw_vec = jnp.tile(jnp.asarray(code_weights, jnp.float32), APR)
        cw_vec = cw_vec.reshape(1, lane_width)
        cw_spec = pl.BlockSpec((1, lane_width), lambda r: (0, 0))    # constant block
        in_specs += [cw_spec]
        args += [cw_vec]
        kernel = _kernel_cw
        extra_vmem = 2 * lane_width * 4
        extra_bytes = lane_width * 4
    else:
        kernel = _kernel_plain

    n_elem = rows * lane_width
    block_main = block_rows * lane_width * itemsize
    vmem_need = 2 * 3 * block_main + extra_vmem              # x, t, o double-buffered
    vmem_limit = int(min(64 << 20, max(8 << 20, vmem_need + (4 << 20))))

    cost = pl.CostEstimate(
        flops=5 * n_elem,                                     # cmp+sel+sub+abs+mul
        transcendentals=0,
        bytes_accessed=int(3 * n_elem * itemsize + extra_bytes))

    out2 = pl.pallas_call(
        kernel,
        out_shape=jax.ShapeDtypeStruct((rows, lane_width), dtype),
        grid_spec=pltpu.PrefetchScalarGridSpec(
            num_scalar_prefetch=0,
            grid=grid,
            in_specs=in_specs,
            out_specs=main_spec),
        compiler_params=pltpu.CompilerParams(
            dimension_semantics=("parallel",),
            vmem_limit_bytes=vmem_limit),
        cost_estimate=cost,
    )(*args)

    out = out2.reshape(n_anchor_pad, C)
    if pad_a:
        out = out[:n_anchor]
    return out.reshape(B, A, C)


# ----------------------------- reference -------------------------------------

def _reference(inp, target, weights=None, code_weights=None):
    target = jnp.where(jnp.isnan(target), inp, target)
    diff = inp - target
    if code_weights is not None:
        diff = diff * jnp.asarray(code_weights, dtype=inp.dtype).reshape(1, 1, -1)
    loss = jnp.abs(diff)
    if weights is not None:
        loss = loss * weights[..., None]
    return loss


if __name__ == "__main__":
    key = jax.random.PRNGKey(0)
    B, A, C = 2, 512, 7   # batch, #anchors, #codes (box-code size)

    k1, k2, k3 = jax.random.split(key, 3)
    inp = jax.random.normal(k1, (B, A, C), dtype=jnp.float32)
    target = jax.random.normal(k2, (B, A, C), dtype=jnp.float32)
    target = target.at[0, 0, 0].set(jnp.nan)          # exercise the nan-mask path
    target = target.at[1, 37, 4].set(jnp.nan)
    weights = jax.random.uniform(k3, (B, A), dtype=jnp.float32)
    code_weights = jnp.linspace(0.5, 1.5, C, dtype=jnp.float32)
    code_weights = code_weights.at[2].set(-0.75)      # negative cw -> |cw| fold path

    # 1) anchor weights + code_weights  (MXU weight-expansion path)
    out = jax.block_until_ready(weighted_l1_loss(inp, target, weights, code_weights))
    assert out.shape == (B, A, C)
    assert jnp.allclose(out, _reference(inp, target, weights, code_weights),
                        atol=1e-6, rtol=1e-5)

    # 2) code_weights only (2 reads + tiny constant row + 1 write)
    out = jax.block_until_ready(weighted_l1_loss(inp, target, None, code_weights))
    assert jnp.allclose(out, _reference(inp, target, None, code_weights),
                        atol=1e-6, rtol=1e-5)

    # 3) plain module defaults (2 reads + 1 write)
    out = jax.block_until_ready(weighted_l1_loss(inp, target))
    assert jnp.allclose(out, _reference(inp, target), atol=1e-6, rtol=1e-5)

    # 4) anchor weights only
    out = jax.block_until_ready(weighted_l1_loss(inp, target, weights, None))
    assert jnp.allclose(out, _reference(inp, target, weights, None),
                        atol=1e-6, rtol=1e-5)

    # 5) larger input -> multi-step grid (megacore split path)
    A2 = 4096
    i2 = jax.random.normal(k1, (B, A2, C), dtype=jnp.float32)
    t2 = jax.random.normal(k2, (B, A2, C), dtype=jnp.float32)
    w2 = jax.random.uniform(k3, (B, A2), dtype=jnp.float32)
    out = jax.block_until_ready(weighted_l1_loss(i2, t2, w2, code_weights))
    assert jnp.allclose(out, _reference(i2, t2, w2, code_weights),
                        atol=1e-6, rtol=1e-5)

    # 6) forced small tile -> multi-step grid with a ragged last block
    out = jax.block_until_ready(
        weighted_l1_loss(i2, t2, w2, code_weights, block_rows=24))
    assert jnp.allclose(out, _reference(i2, t2, w2, code_weights),
                        atol=1e-6, rtol=1e-5)

    # 7) anchor count not a multiple of 128 -> fallback pad path
    A3 = 100
    i3 = jax.random.normal(k1, (B, A3, C), dtype=jnp.float32)
    t3 = jax.random.normal(k2, (B, A3, C), dtype=jnp.float32)
    t3 = t3.at[0, 5, 3].set(jnp.nan)
    w3 = jax.random.uniform(k3, (B, A3), dtype=jnp.float32)
    out = jax.block_until_ready(weighted_l1_loss(i3, t3, w3, code_weights))
    assert jnp.allclose(out, _reference(i3, t3, w3, code_weights),
                        atol=1e-6, rtol=1e-5)

    # 8) bf16 end-to-end (f32 in-kernel math, bf16 I/O)
    A4 = 1024
    ib = jax.random.normal(k1, (B, A4, C), dtype=jnp.float32).astype(jnp.bfloat16)
    tb = jax.random.normal(k2, (B, A4, C), dtype=jnp.float32).astype(jnp.bfloat16)
    wb = jax.random.uniform(k3, (B, A4), dtype=jnp.float32).astype(jnp.bfloat16)
    out = jax.block_until_ready(weighted_l1_loss(ib, tb, wb, code_weights))
    ref_b = _reference(ib.astype(jnp.float32), tb.astype(jnp.float32),
                       wb.astype(jnp.float32), code_weights)
    assert jnp.allclose(out.astype(jnp.float32), ref_b, atol=2e-2, rtol=2e-2)

    print("KERNEL_OK")
</pallas_src>

<mosaic_0001>
module attributes {stable_mosaic.version = 11 : i64} {
  func.func @_kernel_w(%arg0: i32, %arg1: memref<8x896xf32, #tpu.memory_space<vmem>>, %arg2: memref<8x896xf32, #tpu.memory_space<vmem>>, %arg3: memref<8x128xf32, #tpu.memory_space<vmem>>, %arg4: memref<128x896xf32, #tpu.memory_space<vmem>>, %arg5: memref<8x896xf32, #tpu.memory_space<vmem>>) attributes {dimension_semantics = [#tpu.dimension_semantics<parallel>], iteration_bounds = array<i64: 1>, scalar_prefetch = 0 : i64, scratch_operands = 0 : i64, tpu.core_type = #tpu.core_type<tc>, window_params = [{transform_indices = @transform_0, window_bounds = array<i64: 8, 896>}, {transform_indices = @transform_1, window_bounds = array<i64: 8, 896>}, {transform_indices = @transform_2, window_bounds = array<i64: 8, 128>}, {pipeline_mode = #tpu.pipeline_mode<synchronous>, transform_indices = @transform_3, window_bounds = array<i64: 128, 896>}, {transform_indices = @transform_4, window_bounds = array<i64: 8, 896>}]} {
    %c0 = arith.constant 0 : index
    %c0_0 = arith.constant 0 : index
    %0 = vector.load %arg1[%c0, %c0_0] : memref<8x896xf32, #tpu.memory_space<vmem>>, vector<8x896xf32>
    %c0_1 = arith.constant 0 : index
    %c0_2 = arith.constant 0 : index
    %1 = vector.load %arg2[%c0_1, %c0_2] : memref<8x896xf32, #tpu.memory_space<vmem>>, vector<8x896xf32>
    %2 = arith.cmpf one, %1, %1 : vector<8x896xf32>
    %3 = arith.select %2, %0, %1 : vector<8x896xi1>, vector<8x896xf32>
    %4 = arith.subf %0, %3 : vector<8x896xf32>
    %5 = math.absf %4 : vector<8x896xf32>
    %c0_3 = arith.constant 0 : index
    %c0_4 = arith.constant 0 : index
    %6 = vector.load %arg3[%c0_3, %c0_4] : memref<8x128xf32, #tpu.memory_space<vmem>>, vector<8x128xf32>
    %c0_5 = arith.constant 0 : index
    %c0_6 = arith.constant 0 : index
    %7 = vector.load %arg4[%c0_5, %c0_6] : memref<128x896xf32, #tpu.memory_space<vmem>>, vector<128x896xf32>
    %cst = arith.constant dense<0.000000e+00> : vector<8x896xf32>
    %8 = tpu.matmul %6, %7, %cst {dimension_numbers = #tpu.dot_dimension_numbers<[1], [0], [0], [1], [0, 0, 1, 1], [], []>} : vector<8x128xf32>, vector<128x896xf32>, vector<8x896xf32> -> vector<8x896xf32>
    %9 = arith.mulf %5, %8 : vector<8x896xf32>
    %c0_7 = arith.constant 0 : index
    %c0_8 = arith.constant 0 : index
    %10 = vector.load %arg5[%c0_7, %c0_8] : memref<8x896xf32, #tpu.memory_space<vmem>>, vector<8x896xf32>
    tpu.vector_store %arg5[%c0_7, %c0_8], %9 {strides = array<i32>} : memref<8x896xf32, #tpu.memory_space<vmem>>, vector<8x896xf32>,
    return
  }
  func.func @transform_0(%arg0: i32) -> (i32, i32) {
    %c0_i32 = arith.constant 0 : i32
    %c0_i32_0 = arith.constant 0 : i32
    return %arg0, %c0_i32 : i32, i32
  }
  func.func @transform_1(%arg0: i32) -> (i32, i32) {
    %c0_i32 = arith.constant 0 : i32
    %c0_i32_0 = arith.constant 0 : i32
    return %arg0, %c0_i32 : i32, i32
  }
  func.func @transform_2(%arg0: i32) -> (i32, i32) {
    %c0_i32 = arith.constant 0 : i32
    %c0_i32_0 = arith.constant 0 : i32
    return %arg0, %c0_i32 : i32, i32
  }
  func.func @transform_3(%arg0: i32) -> (i32, i32) {
    %c0_i32 = arith.constant 0 : i32
    %c0_i32_0 = arith.constant 0 : i32
    %c0_i32_1 = arith.constant 0 : i32
    return %c0_i32, %c0_i32_0 : i32, i32
  }
  func.func @transform_4(%arg0: i32) -> (i32, i32) {
    %c0_i32 = arith.constant 0 : i32
    %c0_i32_0 = arith.constant 0 : i32
    return %arg0, %c0_i32 : i32, i32
  }
}

</mosaic_0001>

<llo_original>
// kernel: tpu_custom_call.1
$region0: #{tpu_custom_call.1}
  #allocation0 [shape = 'u32[]', space=smem, size = 0x4, offset = 0x4, fixed_abs, tag = 'smem constant byte address 0x4 - core index']
  #allocation1 [shape = 'u32[144,128]{1,0:T(1,128)}', space=vmem, size = 0x12000, scoped, tag = 'internal scratch']
  %s0 = inlined_call_operand.hbm [shape: f32[8,896], index: 0, kind: input, shape index: {}]
  %s1 = inlined_call_operand.hbm [shape: f32[8,896], index: 1, kind: input, shape index: {}]
  %s2 = inlined_call_operand.hbm [shape: f32[8,128], index: 2, kind: input, shape index: {}]
  %s3 = inlined_call_operand.hbm [shape: f32[128,896], index: 3, kind: input, shape index: {}]
  %s4 = inlined_call_operand.hbm [shape: f32[8,896], index: 4, kind: output, shape index: {}]
  %s5 = sld [smem:[#allocation0]]
  $region42: #{tpu_custom_call.1} parent=0
    _
  %s7 = ssub.s32 1, %s5
  %s8 = scalar_select 0, %s7, %s5
  $region1: #{tpu_custom_call.1} parent=0
    #allocation2 [shape = 'u8[28672]{0}', space=vmem, size = 0x7000, scoped, tag = 'input window, operand 0, single buffered']
    #allocation3 [shape = 's32[1]{0}', space=sflag, size = 0x4, scoped, tag = 'scoped memory for tpu_custom_call.1']
    #allocation4 [shape = 's32[1]{0}', space=sflag, size = 0x4, scoped, tag = 'scoped memory for tpu_custom_call.1']
    #allocation5 [shape = 'u8[28672]{0}', space=vmem, size = 0x7000, scoped, tag = 'input window, operand 1, single buffered']
    #allocation6 [shape = 's32[1]{0}', space=sflag, size = 0x4, scoped, tag = 'scoped memory for tpu_custom_call.1']
    #allocation7 [shape = 'u8[4096]{0}', space=vmem, size = 0x1000, scoped, tag = 'input window, operand 2, single buffered']
    #allocation8 [shape = 'u8[458752]{0}', space=vmem, size = 0x70000, scoped, tag = 'input window, operand 3, single buffered']
    #allocation9 [shape = 's32[1]{0}', space=sflag, size = 0x4, scoped, tag = 'scoped memory for tpu_custom_call.1']
    #allocation10 [shape = 'u8[28672]{0}', space=vmem, size = 0x7000, scoped, tag = 'output window, operand 0, single buffered']
    %9 = vsyncpa [#allocation3], 0
    %10 = vsyncpa [#allocation6], 0
    %11 = vsyncpa [#allocation9], 0
    %12 = vsyncpa [#allocation4], 0
    // Predicated region
    $region2: #{tpu_custom_call.1} parent=1 // pred_check
      _
    $region3: #{tpu_custom_call.1} parent=1 // pred_check_branch
      %14 = sbr.rel (0) target = $region5
    $region4: #{tpu_custom_call.1} parent=1 // pred_region
      %s16 = ssub.s32 896, 896
      %17 = vsyncadd [#allocation3], %s16
      %s19 = sshll.u32 [#allocation2], 4
      %s20 = int_to_ptr.vmem [resolvable:$true] %s19
      %22 = dma.hbm_to_vmem [thread:$0]  %s0, 896, %s20, [#allocation3]
    $region5: #{tpu_custom_call.1} parent=1 // pred_fallthru
      _
    // Predicated region
    $region6: #{tpu_custom_call.1} parent=1 // pred_check
      _
    $region7: #{tpu_custom_call.1} parent=1 // pred_check_branch
      %24 = sbr.rel (0) target = $region9
    $region8: #{tpu_custom_call.1} parent=1 // pred_region
      %s26 = ssub.s32 896, 896
      %27 = vsyncadd [#allocation6], %s26
      %s29 = sshll.u32 [#allocation5], 4
      %s30 = int_to_ptr.vmem [resolvable:$true] %s29
      %32 = dma.hbm_to_vmem [thread:$0]  %s1, 896, %s30, [#allocation6]
    $region9: #{tpu_custom_call.1} parent=1 // pred_fallthru
      _
    // Predicated region
    $region10: #{tpu_custom_call.1} parent=1 // pred_check
      _
    $region11: #{tpu_custom_call.1} parent=1 // pred_check_branch
      %34 = sbr.rel (0) target = $region13
    $region12: #{tpu_custom_call.1} parent=1 // pred_region
      %s36 = ssub.s32 128, 128
      %37 = vsyncadd [#allocation6], %s36
      %s39 = sshll.u32 [#allocation7], 4
      %s40 = int_to_ptr.vmem [resolvable:$true] %s39
      %42 = dma.hbm_to_vmem [thread:$0]  %s2, 128, %s40, [#allocation6]
    $region13: #{tpu_custom_call.1} parent=1 // pred_fallthru
      _
    // Predicated region
    $region14: #{tpu_custom_call.1} parent=1 // pred_check
      _
    $region15: #{tpu_custom_call.1} parent=1 // pred_check_branch
      %44 = sbr.rel (0) target = $region17
    $region16: #{tpu_custom_call.1} parent=1 // pred_region
      %s46 = ssub.s32 14336, 14336
      %47 = vsyncadd [#allocation9], %s46
      %s48 = sshll.u32 [#allocation8], 4
      %s49 = int_to_ptr.vmem [resolvable:$true] %s48
      %54 = dma.hbm_to_vmem [thread:$0]  %s3, 14336, %s49, [#allocation9], 896, 896, 56
    $region17: #{tpu_custom_call.1} parent=1 // pred_fallthru
      _
    // Predicated region
    $region18: #{tpu_custom_call.1} parent=1 // pred_check
      _
    $region19: #{tpu_custom_call.1} parent=1 // pred_check_branch
      %56 = sbr.rel (0) target = $region21
    $region20: #{tpu_custom_call.1} parent=1 // pred_region
      %57 = dma.done [#allocation3], 896
    $region21: #{tpu_custom_call.1} parent=1 // pred_fallthru
      _
    // Predicated region
    $region22: #{tpu_custom_call.1} parent=1 // pred_check
      _
    $region23: #{tpu_custom_call.1} parent=1 // pred_check_branch
      %59 = sbr.rel (0) target = $region25
    $region24: #{tpu_custom_call.1} parent=1 // pred_region
      %60 = dma.done [#allocation6], 896
    $region25: #{tpu_custom_call.1} parent=1 // pred_fallthru
      _
    // Predicated region
    $region26: #{tpu_custom_call.1} parent=1 // pred_check
      _
    $region27: #{tpu_custom_call.1} parent=1 // pred_check_branch
      %62 = sbr.rel (0) target = $region29
    $region28: #{tpu_custom_call.1} parent=1 // pred_region
      %63 = dma.done [#allocation6], 128
    $region29: #{tpu_custom_call.1} parent=1 // pred_fallthru
      _
    // Predicated region
    $region30: #{tpu_custom_call.1} parent=1 // pred_check
      _
    $region31: #{tpu_custom_call.1} parent=1 // pred_check_branch
      %65 = sbr.rel (0) target = $region33
    $region32: #{tpu_custom_call.1} parent=1 // pred_region
      %66 = dma.done [#allocation9], 14336
    $region33: #{tpu_custom_call.1} parent=1 // pred_fallthru
      _
    %v67 = vld [vmem:[#allocation2] sm:$0xff]
    %v68 = vld [vmem:[#allocation2 + $0x8] sm:$0xff]
    %v69 = vld [vmem:[#allocation2 + $0x10] sm:$0xff]
    %v70 = vld [vmem:[#allocation2 + $0x18] sm:$0xff]
    %v71 = vld [vmem:[#allocation2 + $0x20] sm:$0xff]
    %v72 = vld [vmem:[#allocation2 + $0x28] sm:$0xff]
    %v73 = vld [vmem:[#allocation2 + $0x30] sm:$0xff]
    %v74 = vld [vmem:[#allocation5] sm:$0xff]
    %v75 = vld [vmem:[#allocation5 + $0x8] sm:$0xff]
    %v76 = vld [vmem:[#allocation5 + $0x10] sm:$0xff]
    %v77 = vld [vmem:[#allocation5 + $0x18] sm:$0xff]
    %v78 = vld [vmem:[#allocation5 + $0x20] sm:$0xff]
    %v79 = vld [vmem:[#allocation5 + $0x28] sm:$0xff]
    %v80 = vld [vmem:[#allocation5 + $0x30] sm:$0xff]
    %vm81 = vcmp.ne.f32.partialorder %v74, %v74
    %vm82 = vcmp.ne.f32.partialorder %v75, %v75
    %vm83 = vcmp.ne.f32.partialorder %v76, %v76
    %vm84 = vcmp.ne.f32.partialorder %v77, %v77
    %vm85 = vcmp.ne.f32.partialorder %v78, %v78
    %vm86 = vcmp.ne.f32.partialorder %v79, %v79
    %vm87 = vcmp.ne.f32.partialorder %v80, %v80
    %v88 = vsel %vm81, %v67, %v74
    %v89 = vsel %vm82, %v68, %v75
    %v90 = vsel %vm83, %v69, %v76
    %v91 = vsel %vm84, %v70, %v77
    %v92 = vsel %vm85, %v71, %v78
    %v93 = vsel %vm86, %v72, %v79
    %v94 = vsel %vm87, %v73, %v80
    %v95 = vsub.f32 %v67, %v88
    %v96 = vsub.f32 %v68, %v89
    %v97 = vsub.f32 %v69, %v90
    %v98 = vsub.f32 %v70, %v91
    %v99 = vsub.f32 %v71, %v92
    %v100 = vsub.f32 %v72, %v93
    %v101 = vsub.f32 %v73, %v94
    %v102 = vand.u32 2147483647, %v95
    %v103 = vand.u32 2147483647, %v96
    %v104 = vand.u32 2147483647, %v97
    %v105 = vand.u32 2147483647, %v98
    %v106 = vand.u32 2147483647, %v99
    %v107 = vand.u32 2147483647, %v100
    %v108 = vand.u32 2147483647, %v101
    %v109 = vld [vmem:[#allocation7] sm:$0xff]
    %v110 = vld [vmem:[#allocation8] sm:$0xff]
    %v111 = vld [vmem:[#allocation8 + $0x8] sm:$0xff]
    %v112 = vld [vmem:[#allocation8 + $0x10] sm:$0xff]
    %v113 = vld [vmem:[#allocation8 + $0x18] sm:$0xff]
    %v114 = vld [vmem:[#allocation8 + $0x20] sm:$0xff]
    %v115 = vld [vmem:[#allocation8 + $0x28] sm:$0xff]
    %v116 = vld [vmem:[#allocation8 + $0x30] sm:$0xff]
    %v117 = vld [vmem:[#allocation8 + $0x38] sm:$0xff]
    %v118 = vld [vmem:[#allocation8 + $0x40] sm:$0xff]
    %v119 = vld [vmem:[#allocation8 + $0x48] sm:$0xff]
    %v120 = vld [vmem:[#allocation8 + $0x50] sm:$0xff]
    %v121 = vld [vmem:[#allocation8 + $0x58] sm:$0xff]
    %v122 = vld [vmem:[#allocation8 + $0x60] sm:$0xff]
    %v123 = vld [vmem:[#allocation8 + $0x68] sm:$0xff]
    %v124 = vld [vmem:[#allocation8 + $0x70] sm:$0xff]
    %v125 = vld [vmem:[#allocation8 + $0x78] sm:$0xff]
    %v126 = vld [vmem:[#allocation8 + $0x80] sm:$0xff]
    %v127 = vld [vmem:[#allocation8 + $0x88] sm:$0xff]
    %v128 = vld [vmem:[#allocation8 + $0x90] sm:$0xff]
    %v129 = vld [vmem:[#allocation8 + $0x98] sm:$0xff]
    %v130 = vld [vmem:[#allocation8 + $0xa0] sm:$0xff]
    %v131 = vld [vmem:[#allocation8 + $0xa8] sm:$0xff]
    %v132 = vld [vmem:[#allocation8 + $0xb0] sm:$0xff]
    %v133 = vld [vmem:[#allocation8 + $0xb8] sm:$0xff]
    %v134 = vld [vmem:[#allocation8 + $0xc0] sm:$0xff]
    %v135 = vld [vmem:[#allocation8 + $0xc8] sm:$0xff]
    %v136 = vld [vmem:[#allocation8 + $0xd0] sm:$0xff]
    %v137 = vld [vmem:[#allocation8 + $0xd8] sm:$0xff]
    %v138 = vld [vmem:[#allocation8 + $0xe0] sm:$0xff]
    %v139 = vld [vmem:[#allocation8 + $0xe8] sm:$0xff]
    %v140 = vld [vmem:[#allocation8 + $0xf0] sm:$0xff]
    %v141 = vld [vmem:[#allocation8 + $0xf8] sm:$0xff]
    %v142 = vld [vmem:[#allocation8 + $0x100] sm:$0xff]
    %v143 = vld [vmem:[#allocation8 + $0x108] sm:$0xff]
    %v144 = vld [vmem:[#allocation8 + $0x110] sm:$0xff]
    %v145 = vld [vmem:[#allocation8 + $0x118] sm:$0xff]
    %v146 = vld [vmem:[#allocation8 + $0x120] sm:$0xff]
    %v147 = vld [vmem:[#allocation8 + $0x128] sm:$0xff]
    %v148 = vld [vmem:[#allocation8 + $0x130] sm:$0xff]
    %v149 = vld [vmem:[#allocation8 + $0x138] sm:$0xff]
    %v150 = vld [vmem:[#allocation8 + $0x140] sm:$0xff]
    %v151 = vld [vmem:[#allocation8 + $0x148] sm:$0xff]
    %v152 = vld [vmem:[#allocation8 + $0x150] sm:$0xff]
    %v153 = vld [vmem:[#allocation8 + $0x158] sm:$0xff]
    %v154 = vld [vmem:[#allocation8 + $0x160] sm:$0xff]
    %v155 = vld [vmem:[#allocation8 + $0x168] sm:$0xff]
    %v156 = vld [vmem:[#allocation8 + $0x170] sm:$0xff]
    %v157 = vld [vmem:[#allocation8 + $0x178] sm:$0xff]
    %v158 = vld [vmem:[#allocation8 + $0x180] sm:$0xff]
    %v159 = vld [vmem:[#allocation8 + $0x188] sm:$0xff]
    %v160 = vld [vmem:[#allocation8 + $0x190] sm:$0xff]
    %v161 = vld [vmem:[#allocation8 + $0x198] sm:$0xff]
    %v162 = vld [vmem:[#allocation8 + $0x1a0] sm:$0xff]
    %v163 = vld [vmem:[#allocation8 + $0x1a8] sm:$0xff]
    %v164 = vld [vmem:[#allocation8 + $0x1b0] sm:$0xff]
    %v165 = vld [vmem:[#allocation8 + $0x1b8] sm:$0xff]
    %v166 = vld [vmem:[#allocation8 + $0x1c0] sm:$0xff]
    %v167 = vld [vmem:[#allocation8 + $0x1c8] sm:$0xff]
    %v168 = vld [vmem:[#allocation8 + $0x1d0] sm:$0xff]
    %v169 = vld [vmem:[#allocation8 + $0x1d8] sm:$0xff]
    %v170 = vld [vmem:[#allocation8 + $0x1e0] sm:$0xff]
    %v171 = vld [vmem:[#allocation8 + $0x1e8] sm:$0xff]
    %v172 = vld [vmem:[#allocation8 + $0x1f0] sm:$0xff]
    %v173 = vld [vmem:[#allocation8 + $0x1f8] sm:$0xff]
    %v174 = vld [vmem:[#allocation8 + $0x200] sm:$0xff]
    %v175 = vld [vmem:[#allocation8 + $0x208] sm:$0xff]
    %v176 = vld [vmem:[#allocation8 + $0x210] sm:$0xff]
    %v177 = vld [vmem:[#allocation8 + $0x218] sm:$0xff]
    %v178 = vld [vmem:[#allocation8 + $0x220] sm:$0xff]
    %v179 = vld [vmem:[#allocation8 + $0x228] sm:$0xff]
    %v180 = vld [vmem:[#allocation8 + $0x230] sm:$0xff]
    %v181 = vld [vmem:[#allocation8 + $0x238] sm:$0xff]
    %v182 = vld [vmem:[#allocation8 + $0x240] sm:$0xff]
    %v183 = vld [vmem:[#allocation8 + $0x248] sm:$0xff]
    %v184 = vld [vmem:[#allocation8 + $0x250] sm:$0xff]
    %v185 = vld [vmem:[#allocation8 + $0x258] sm:$0xff]
    %v186 = vld [vmem:[#allocation8 + $0x260] sm:$0xff]
    %v187 = vld [vmem:[#allocation8 + $0x268] sm:$0xff]
    %v188 = vld [vmem:[#allocation8 + $0x270] sm:$0xff]
    %v189 = vld [vmem:[#allocation8 + $0x278] sm:$0xff]
    %v190 = vld [vmem:[#allocation8 + $0x280] sm:$0xff]
    %v191 = vld [vmem:[#allocation8 + $0x288] sm:$0xff]
    %v192 = vld [vmem:[#allocation8 + $0x290] sm:$0xff]
    %v193 = vld [vmem:[#allocation8 + $0x298] sm:$0xff]
    %v194 = vld [vmem:[#allocation8 + $0x2a0] sm:$0xff]
    %v195 = vld [vmem:[#allocation8 + $0x2a8] sm:$0xff]
    %v196 = vld [vmem:[#allocation8 + $0x2b0] sm:$0xff]
    %v197 = vld [vmem:[#allocation8 + $0x2b8] sm:$0xff]
    %v198 = vld [vmem:[#allocation8 + $0x2c0] sm:$0xff]
    %v199 = vld [vmem:[#allocation8 + $0x2c8] sm:$0xff]
    %v200 = vld [vmem:[#allocation8 + $0x2d0] sm:$0xff]
    %v201 = vld [vmem:[#allocation8 + $0x2d8] sm:$0xff]
    %v202 = vld [vmem:[#allocation8 + $0x2e0] sm:$0xff]
    %v203 = vld [vmem:[#allocation8 + $0x2e8] sm:$0xff]
    %v204 = vld [vmem:[#allocation8 + $0x2f0] sm:$0xff]
    %v205 = vld [vmem:[#allocation8 + $0x2f8] sm:$0xff]
    %v206 = vld [vmem:[#allocation8 + $0x300] sm:$0xff]
    %v207 = vld [vmem:[#allocation8 + $0x308] sm:$0xff]
    %v208 = vld [vmem:[#allocation8 + $0x310] sm:$0xff]
    %v209 = vld [vmem:[#allocation8 + $0x318] sm:$0xff]
    %v210 = vld [vmem:[#allocation8 + $0x320] sm:$0xff]
    %v211 = vld [vmem:[#allocation8 + $0x328] sm:$0xff]
    %v212 = vld [vmem:[#allocation8 + $0x330] sm:$0xff]
    %v213 = vld [vmem:[#allocation8 + $0x338] sm:$0xff]
    %v214 = vld [vmem:[#allocation8 + $0x340] sm:$0xff]
    %v215 = vld [vmem:[#allocation8 + $0x348] sm:$0xff]
    %v216 = vld [vmem:[#allocation8 + $0x350] sm:$0xff]
    %v217 = vld [vmem:[#allocation8 + $0x358] sm:$0xff]
    %v218 = vld [vmem:[#allocation8 + $0x360] sm:$0xff]
    %v219 = vld [vmem:[#allocation8 + $0x368] sm:$0xff]
    %v220 = vld [vmem:[#allocation8 + $0x370] sm:$0xff]
    %v221 = vld [vmem:[#allocation8 + $0x378] sm:$0xff]
    %222 = vmatprep.subr.mxu0 %v216
    %223 = vmatpush1.msra.mxu0 %v215
    %224 = vmatprep.subr.mxu0 %v209
    %225 = vmatpush1.msra.mxu0 %v208
    %226 = vmatprep.subr.mxu0 %v202
    %227 = vmatpush1.msra.mxu0 %v201
    %228 = vmatprep.subr.mxu0 %v195
    %229 = vmatpush1.msra.mxu0 %v194
    %230 = vmatprep.subr.mxu0 %v188
    %231 = vmatpush1.msra.mxu0 %v187
    %232 = vmatprep.subr.mxu0 %v181
    %233 = vmatpush1.msra.mxu0 %v180
    %234 = vmatprep.subr.mxu0 %v174
    %235 = vmatpush1.msra.mxu0 %v173
    %236 = vmatprep.subr.mxu0 %v167
    %237 = vmatpush1.msra.mxu0 %v166
    %238 = vmatprep.subr.mxu0 %v160
    %239 = vmatpush1.msra.mxu0 %v159
    %240 = vmatprep.subr.mxu0 %v153
    %241 = vmatpush1.msra.mxu0 %v152
    %242 = vmatprep.subr.mxu0 %v146
    %243 = vmatpush1.msra.mxu0 %v145
    %244 = vmatprep.subr.mxu0 %v139
    %245 = vmatpush1.msra.mxu0 %v138
    %246 = vmatprep.subr.mxu0 %v132
    %247 = vmatpush1.msra.mxu0 %v131
    %248 = vmatprep.subr.mxu0 %v125
    %249 = vmatpush1.msra.mxu0 %v124
    %250 = vmatprep.subr.mxu0 %v118
    %251 = vmatpush1.msra.mxu0 %v117
    %252 = vmatprep.subr.mxu0 %v111
    %253 = vmatpush1.msra.mxu0 %v110
    %254 = vmatprep.subr.mxu0 0.0
    %255 = vmatpush2.msra.mxu0 0.0
    %256 = vmatprep.subr.mxu0 0.0
    %257 = vmatpush2.msra.mxu0 0.0
    %258 = vmatprep.subr.mxu0 0.0
    %259 = vmatpush2.msra.mxu0 0.0
    %260 = vmatprep.subr.mxu0 0.0
    %261 = vmatpush2.msra.mxu0 0.0
    %262 = vmatprep.subr.mxu0 0.0
    %263 = vmatpush2.msra.mxu0 0.0
    %264 = vmatprep.subr.mxu0 0.0
    %265 = vmatpush2.msra.mxu0 0.0
    %266 = vmatprep.subr.mxu0 0.0
    %267 = vmatpush2.msra.mxu0 0.0
    %268 = vmatprep.subr.mxu0 0.0
    %269 = vmatpush2.msra.mxu0 0.0
    %270 = vmatprep.subr.mxu0 0.0
    %271 = vmatpush2.msra.mxu0 0.0
    %272 = vmatprep.subr.mxu0 0.0
    %273 = vmatpush2.msra.mxu0 0.0
    %274 = vmatprep.subr.mxu0 0.0
    %275 = vmatpush2.msra.mxu0 0.0
    %276 = vmatprep.subr.mxu0 0.0
    %277 = vmatpush2.msra.mxu0 0.0
    %278 = vmatprep.subr.mxu0 0.0
    %279 = vmatpush2.msra.mxu0 0.0
    %280 = vmatprep.subr.mxu0 0.0
    %281 = vmatpush2.msra.mxu0 0.0
    %282 = vmatprep.subr.mxu0 0.0
    %283 = vmatpush2.msra.mxu0 0.0
    %284 = vmatprep.subr.mxu0 0.0
    %285 = vmatpush2.msra.mxu0 0.0
    %286 = vmatprep.mubr.f32.mxu0 0.0
    %287 = vmatmul.mubr.f32.gmra.mxu0 %v109
    %v288 = vpop.f32.mrf.mxu0
    %v289 = vadd.f32 0.0, %v288
    %v290 = vpop.f32.mrf.mxu0
    %v291 = vadd.f32 0.0, %v290
    %292 = vdwg.mxu0
    %293 = vmatprep.subr.mxu0 %v218
    %294 = vmatpush1.msra.mxu0 %v217
    %295 = vmatprep.subr.mxu0 %v211
    %296 = vmatpush1.msra.mxu0 %v210
    %297 = vmatprep.subr.mxu0 %v204
    %298 = vmatpush1.msra.mxu0 %v203
    %299 = vmatprep.subr.mxu0 %v197
    %300 = vmatpush1.msra.mxu0 %v196
    %301 = vmatprep.subr.mxu0 %v190
    %302 = vmatpush1.msra.mxu0 %v189
    %303 = vmatprep.subr.mxu0 %v183
    %304 = vmatpush1.msra.mxu0 %v182
    %305 = vmatprep.subr.mxu0 %v176
    %306 = vmatpush1.msra.mxu0 %v175
    %307 = vmatprep.subr.mxu0 %v169
    %308 = vmatpush1.msra.mxu0 %v168
    %309 = vmatprep.subr.mxu0 %v162
    %310 = vmatpush1.msra.mxu0 %v161
    %311 = vmatprep.subr.mxu0 %v155
    %312 = vmatpush1.msra.mxu0 %v154
    %313 = vmatprep.subr.mxu0 %v148
    %314 = vmatpush1.msra.mxu0 %v147
    %315 = vmatprep.subr.mxu0 %v141
    %316 = vmatpush1.msra.mxu0 %v140
    %317 = vmatprep.subr.mxu0 %v134
    %318 = vmatpush1.msra.mxu0 %v133
    %319 = vmatprep.subr.mxu0 %v127
    %320 = vmatpush1.msra.mxu0 %v126
    %321 = vmatprep.subr.mxu0 %v120
    %322 = vmatpush1.msra.mxu0 %v119
    %323 = vmatprep.subr.mxu0 %v113
    %324 = vmatpush1.msra.mxu0 %v112
    %325 = vmatprep.subr.mxu0 0.0
    %326 = vmatpush2.msra.mxu0 0.0
    %327 = vmatprep.subr.mxu0 0.0
    %328 = vmatpush2.msra.mxu0 0.0
    %329 = vmatprep.subr.mxu0 0.0
    %330 = vmatpush2.msra.mxu0 0.0
    %331 = vmatprep.subr.mxu0 0.0
    %332 = vmatpush2.msra.mxu0 0.0
    %333 = vmatprep.subr.mxu0 0.0
    %334 = vmatpush2.msra.mxu0 0.0
    %335 = vmatprep.subr.mxu0 0.0
    %336 = vmatpush2.msra.mxu0 0.0
    %337 = vmatprep.subr.mxu0 0.0
    %338 = vmatpush2.msra.mxu0 0.0
    %339 = vmatprep.subr.mxu0 0.0
    %340 = vmatpush2.msra.mxu0 0.0
    %341 = vmatprep.subr.mxu0 0.0
    %342 = vmatpush2.msra.mxu0 0.0
    %343 = vmatprep.subr.mxu0 0.0
    %344 = vmatpush2.msra.mxu0 0.0
    %345 = vmatprep.subr.mxu0 0.0
    %346 = vmatpush2.msra.mxu0 0.0
    %347 = vmatprep.subr.mxu0 0.0
    %348 = vmatpush2.msra.mxu0 0.0
    %349 = vmatprep.subr.mxu0 0.0
    %350 = vmatpush2.msra.mxu0 0.0
    %351 = vmatprep.subr.mxu0 0.0
    %352 = vmatpush2.msra.mxu0 0.0
    %353 = vmatprep.subr.mxu0 0.0
    %354 = vmatpush2.msra.mxu0 0.0
    %355 = vmatprep.subr.mxu0 0.0
    %356 = vmatpush2.msra.mxu0 0.0
    %357 = vmatprep.mubr.f32.mxu0 0.0
    %358 = vmatmul.mubr.f32.gmra.mxu0 %v109
    %v359 = vpop.f32.mrf.mxu0
    %v360 = vadd.f32 0.0, %v359
    %v361 = vpop.f32.mrf.mxu0
    %v362 = vadd.f32 0.0, %v361
    %363 = vdwg.mxu0
    %364 = vmatprep.subr.mxu0 %v220
    %365 = vmatpush1.msra.mxu0 %v219
    %366 = vmatprep.subr.mxu0 %v213
    %367 = vmatpush1.msra.mxu0 %v212
    %368 = vmatprep.subr.mxu0 %v206
    %369 = vmatpush1.msra.mxu0 %v205
    %370 = vmatprep.subr.mxu0 %v199
    %371 = vmatpush1.msra.mxu0 %v198
    %372 = vmatprep.subr.mxu0 %v192
    %373 = vmatpush1.msra.mxu0 %v191
    %374 = vmatprep.subr.mxu0 %v185
    %375 = vmatpush1.msra.mxu0 %v184
    %376 = vmatprep.subr.mxu0 %v178
    %377 = vmatpush1.msra.mxu0 %v177
    %378 = vmatprep.subr.mxu0 %v171
    %379 = vmatpush1.msra.mxu0 %v170
    %380 = vmatprep.subr.mxu0 %v164
    %381 = vmatpush1.msra.mxu0 %v163
    %382 = vmatprep.subr.mxu0 %v157
    %383 = vmatpush1.msra.mxu0 %v156
    %384 = vmatprep.subr.mxu0 %v150
    %385 = vmatpush1.msra.mxu0 %v149
    %386 = vmatprep.subr.mxu0 %v143
    %387 = vmatpush1.msra.mxu0 %v142
    %388 = vmatprep.subr.mxu0 %v136
    %389 = vmatpush1.msra.mxu0 %v135
    %390 = vmatprep.subr.mxu0 %v129
    %391 = vmatpush1.msra.mxu0 %v128
    %392 = vmatprep.subr.mxu0 %v122
    %393 = vmatpush1.msra.mxu0 %v121
    %394 = vmatprep.subr.mxu0 %v115
    %395 = vmatpush1.msra.mxu0 %v114
    %396 = vmatprep.subr.mxu0 0.0
    %397 = vmatpush2.msra.mxu0 0.0
    %398 = vmatprep.subr.mxu0 0.0
    %399 = vmatpush2.msra.mxu0 0.0
    %400 = vmatprep.subr.mxu0 0.0
    %401 = vmatpush2.msra.mxu0 0.0
    %402 = vmatprep.subr.mxu0 0.0
    %403 = vmatpush2.msra.mxu0 0.0
    %404 = vmatprep.subr.mxu0 0.0
    %405 = vmatpush2.msra.mxu0 0.0
    %406 = vmatprep.subr.mxu0 0.0
    %407 = vmatpush2.msra.mxu0 0.0
    %408 = vmatprep.subr.mxu0 0.0
    %409 = vmatpush2.msra.mxu0 0.0
    %410 = vmatprep.subr.mxu0 0.0
    %411 = vmatpush2.msra.mxu0 0.0
    %412 = vmatprep.subr.mxu0 0.0
    %413 = vmatpush2.msra.mxu0 0.0
    %414 = vmatprep.subr.mxu0 0.0
    %415 = vmatpush2.msra.mxu0 0.0
    %416 = vmatprep.subr.mxu0 0.0
    %417 = vmatpush2.msra.mxu0 0.0
    %418 = vmatprep.subr.mxu0 0.0
    %419 = vmatpush2.msra.mxu0 0.0
    %420 = vmatprep.subr.mxu0 0.0
    %421 = vmatpush2.msra.mxu0 0.0
    %422 = vmatprep.subr.mxu0 0.0
    %423 = vmatpush2.msra.mxu0 0.0
    %424 = vmatprep.subr.mxu0 0.0
    %425 = vmatpush2.msra.mxu0 0.0
    %426 = vmatprep.subr.mxu0 0.0
    %427 = vmatpush2.msra.mxu0 0.0
    %428 = vmatprep.mubr.f32.mxu0 0.0
    %429 = vmatmul.mubr.f32.gmra.mxu0 %v109
    %v430 = vpop.f32.mrf.mxu0
    %v431 = vadd.f32 0.0, %v430
    %v432 = vpop.f32.mrf.mxu0
    %v433 = vadd.f32 0.0, %v432
    %434 = vdwg.mxu0
    %435 = vmatprep.subr.mxu0 0.0
    %436 = vmatpush1.msra.mxu0 %v221
    %437 = vmatprep.subr.mxu0 0.0
    %438 = vmatpush1.msra.mxu0 %v214
    %439 = vmatprep.subr.mxu0 0.0
    %440 = vmatpush1.msra.mxu0 %v207
    %441 = vmatprep.subr.mxu0 0.0
    %442 = vmatpush1.msra.mxu0 %v200
    %443 = vmatprep.subr.mxu0 0.0
    %444 = vmatpush1.msra.mxu0 %v193
    %445 = vmatprep.subr.mxu0 0.0
    %446 = vmatpush1.msra.mxu0 %v186
    %447 = vmatprep.subr.mxu0 0.0
    %448 = vmatpush1.msra.mxu0 %v179
    %449 = vmatprep.subr.mxu0 0.0
    %450 = vmatpush1.msra.mxu0 %v172
    %451 = vmatprep.subr.mxu0 0.0
    %452 = vmatpush1.msra.mxu0 %v165
    %453 = vmatprep.subr.mxu0 0.0
    %454 = vmatpush1.msra.mxu0 %v158
    %455 = vmatprep.subr.mxu0 0.0
    %456 = vmatpush1.msra.mxu0 %v151
    %457 = vmatprep.subr.mxu0 0.0
    %458 = vmatpush1.msra.mxu0 %v144
    %459 = vmatprep.subr.mxu0 0.0
    %460 = vmatpush1.msra.mxu0 %v137
    %461 = vmatprep.subr.mxu0 0.0
    %462 = vmatpush1.msra.mxu0 %v130
    %463 = vmatprep.subr.mxu0 0.0
    %464 = vmatpush1.msra.mxu0 %v123
    %465 = vmatprep.subr.mxu0 0.0
    %466 = vmatpush1.msra.mxu0 %v116
    %467 = vmatprep.subr.mxu0 0.0
    %468 = vmatpush2.msra.mxu0 0.0
    %469 = vmatprep.subr.mxu0 0.0
    %470 = vmatpush2.msra.mxu0 0.0
    %471 = vmatprep.subr.mxu0 0.0
    %472 = vmatpush2.msra.mxu0 0.0
    %473 = vmatprep.subr.mxu0 0.0
    %474 = vmatpush2.msra.mxu0 0.0
    %475 = vmatprep.subr.mxu0 0.0
    %476 = vmatpush2.msra.mxu0 0.0
    %477 = vmatprep.subr.mxu0 0.0
    %478 = vmatpush2.msra.mxu0 0.0
    %479 = vmatprep.subr.mxu0 0.0
    %480 = vmatpush2.msra.mxu0 0.0
    %481 = vmatprep.subr.mxu0 0.0
    %482 = vmatpush2.msra.mxu0 0.0
    %483 = vmatprep.subr.mxu0 0.0
    %484 = vmatpush2.msra.mxu0 0.0
    %485 = vmatprep.subr.mxu0 0.0
    %486 = vmatpush2.msra.mxu0 0.0
    %487 = vmatprep.subr.mxu0 0.0
    %488 = vmatpush2.msra.mxu0 0.0
    %489 = vmatprep.subr.mxu0 0.0
    %490 = vmatpush2.msra.mxu0 0.0
    %491 = vmatprep.subr.mxu0 0.0
    %492 = vmatpush2.msra.mxu0 0.0
    %493 = vmatprep.subr.mxu0 0.0
    %494 = vmatpush2.msra.mxu0 0.0
    %495 = vmatprep.subr.mxu0 0.0
    %496 = vmatpush2.msra.mxu0 0.0
    %497 = vmatprep.subr.mxu0 0.0
    %498 = vmatpush2.msra.mxu0 0.0
    %499 = vmatprep.mubr.f32.mxu0 0.0
    %500 = vmatmul.mubr.f32.gmra.mxu0 %v109
    %v501 = vpop.f32.mrf.mxu0
    %v502 = vadd.f32 0.0, %v501
    %v503 = vpop.f32.mrf.mxu0
    %504 = vdwg.mxu0
    %v505 = vmul.f32 %v102, %v289
    %v506 = vmul.f32 %v103, %v291
    %v507 = vmul.f32 %v104, %v360
    %v508 = vmul.f32 %v105, %v362
    %v509 = vmul.f32 %v106, %v431
    %v510 = vmul.f32 %v107, %v433
    %v511 = vmul.f32 %v108, %v502
    %512 = vst [vmem:[#allocation10] sm:$0xff] %v505
    %513 = vst [vmem:[#allocation10 + $0x8] sm:$0xff] %v506
    %514 = vst [vmem:[#allocation10 + $0x10] sm:$0xff] %v507
    %515 = vst [vmem:[#allocation10 + $0x18] sm:$0xff] %v508
    %516 = vst [vmem:[#allocation10 + $0x20] sm:$0xff] %v509
    %517 = vst [vmem:[#allocation10 + $0x28] sm:$0xff] %v510
    %518 = vst [vmem:[#allocation10 + $0x30] sm:$0xff] %v511
    // Predicated region
    $region34: #{tpu_custom_call.1} parent=1 // pred_check
      _
    $region35: #{tpu_custom_call.1} parent=1 // pred_check_branch
      %520 = sbr.rel (0) target = $region37
    $region36: #{tpu_custom_call.1} parent=1 // pred_region
      %s522 = ssub.s32 896, 896
      %523 = vsyncadd [#allocation4], %s522
      %s525 = sshll.u32 [#allocation10], 4
      %s526 = int_to_ptr.vmem [resolvable:$true] %s525
      %528 = dma.vmem_to_hbm [thread:$0]  %s526, 896, %s4, [#allocation4]
    $region37: #{tpu_custom_call.1} parent=1 // pred_fallthru
      _
    // Predicated region
    $region38: #{tpu_custom_call.1} parent=1 // pred_check
      _
    $region39: #{tpu_custom_call.1} parent=1 // pred_check_branch
      %530 = sbr.rel (0) target = $region41
    $region40: #{tpu_custom_call.1} parent=1 // pred_region
      %531 = dma.done [#allocation4], 896
    $region41: #{tpu_custom_call.1} parent=1 // pred_fallthru
      _
    %532 = vsyncpa [#allocation3], 1
    %533 = vsyncpa [#allocation6], 1
    %534 = vsyncpa [#allocation9], 1
    %535 = vsyncpa [#allocation4], 1

</llo_original>
